<compile_context>
chip_gen: v7x
topology: tpu7x:2x2x1
jax: 0.10.0
libtpu: 0.0.40
codegen_flags: <defaults>
</compile_context>

<pallas_src>
import functools

import jax
import jax.numpy as jnp
from jax.experimental import pallas as pl
from jax.experimental.pallas import tpu as pltpu


def _round_up(v, m):
    return ((v + m - 1) // m) * m


def _mlp_ce_kernel(x_ref, y_ref, w1_ref, b1_ref, w2_ref, b2_ref, w3_ref, b3_ref,
                   pred_ref, loss_ref, *, out_hsz, batch, tile_b):
    # x is bf16 with BatchNorm already folded into w1/b1 (wrapper).
    x = x_ref[...]                                            # [TB, IN_P] bf16

    # --- Linear1 (+ folded BN) + ReLU : bf16 MXU operands, f32 accumulation ---
    h = jnp.dot(x, w1_ref[...], preferred_element_type=jnp.float32) + b1_ref[...]
    h = jnp.maximum(h, 0.0)

    # --- Dropout(0.1): identity (deterministic / eval mode) ---
    # TODO(synk): training-mode dropout randomness intentionally omitted.

    # --- smooth: Linear + ReLU ---
    h2 = jnp.dot(h.astype(jnp.bfloat16), w2_ref[...],
                 preferred_element_type=jnp.float32) + b2_ref[...]
    h2 = jnp.maximum(h2, 0.0)

    # --- predict: Linear -> logits on a lane-dense (padded-to-128) slab ---
    logits = jnp.dot(h2.astype(jnp.bfloat16), w3_ref[...],
                     preferred_element_type=jnp.float32) + b3_ref[...]   # [TB, OUTP]

    tb, outp = logits.shape
    col = jax.lax.broadcasted_iota(jnp.int32, (tb, outp), 1)
    valid_col = col < out_hsz

    # --- numerically stable softmax over the real out_hsz columns only ---
    lm = jnp.where(valid_col, logits, -1e30)
    m = jnp.max(lm, axis=-1, keepdims=True)                   # [TB, 1]
    e = jnp.where(valid_col, jnp.exp(lm - m), 0.0)            # padded cols -> 0
    s = jnp.sum(e, axis=-1, keepdims=True)                    # [TB, 1]
    # bf16 writeback (precision change flagged): halves the HBM store traffic.
    pred_ref[...] = (e * pl.reciprocal(s, approx=True)).astype(pred_ref.dtype)

    # --- cross-entropy with integer labels (iota compare + select, no one-hot) ---
    lse = m + jnp.log(s)                                      # [TB, 1]
    picked = jnp.sum(jnp.where(col == y_ref[...], logits, 0.0),
                     axis=-1, keepdims=True)                  # [TB, 1]
    # mask out batch-padding rows (global row index >= real batch size)
    row = pl.program_id(0) * tile_b + jax.lax.broadcasted_iota(jnp.int32, (tb, 1), 0)
    nll = jnp.where(row < batch, lse - picked, 0.0)
    # per-tile sum; the mean over the FULL batch is finished in the wrapper.
    loss_ref[0, 0] = jnp.sum(nll)


def linear_model_forward(x, y, params):
    """x: [B, in_hsz] float32, y: [B] integer class labels."""
    B, in_hsz = x.shape
    hidden = params["w1"].shape[1]
    h4 = params["w2"].shape[1]
    out_hsz = params["w3"].shape[1]

    # Lane/MXU-friendly padded dims (zero-padding is mathematically exact).
    IN_P = _round_up(in_hsz, 128)
    HID_P = _round_up(hidden, 128)
    H4_P = _round_up(h4, 128)
    OUTP = _round_up(out_hsz, 128)

    # --- BatchNorm1d (training-mode batch stats) folded into linear1, f32 ---
    eps = 1e-5
    mean = jnp.mean(x, axis=0, keepdims=True)                  # [1, in]
    var = jnp.var(x, axis=0, keepdims=True)                    # [1, in] (biased)
    scale = params["gamma"] * jax.lax.rsqrt(var + eps)         # [1, in]
    shift = params["beta"] - mean * scale                      # [1, in]
    w1f = params["w1"] * scale.reshape(in_hsz, 1)              # [in, hidden]
    b1f = params["b1"] + shift @ params["w1"]                  # [1, hidden]

    # --- bf16 weights (halves weight DMA), zero-padded; biases stay f32 ---
    w1p = jnp.pad(w1f, ((0, IN_P - in_hsz), (0, HID_P - hidden))).astype(jnp.bfloat16)
    b1p = jnp.pad(b1f, ((0, 0), (0, HID_P - hidden)))
    w2p = jnp.pad(params["w2"], ((0, HID_P - hidden), (0, H4_P - h4))).astype(jnp.bfloat16)
    b2p = jnp.pad(params["b2"], ((0, 0), (0, H4_P - h4)))
    w3p = jnp.pad(params["w3"], ((0, H4_P - h4), (0, OUTP - out_hsz))).astype(jnp.bfloat16)
    b3p = jnp.pad(params["b3"], ((0, 0), (0, OUTP - out_hsz)))

    # --- batch tiling: chip-aware tile size, ragged batch handled by padding ---
    try:
        vmem_cap = pltpu.get_tpu_info().vmem_capacity_bytes
    except Exception:  # conservative fallback (sized for v7x's 64 MiB)
        vmem_cap = 64 * 1024 * 1024
    tile_cap = 512 if vmem_cap >= 100 * 1024 * 1024 else 256   # v5e/v6e vs v7x
    TB = tile_cap if B > tile_cap else _round_up(max(B, 8), 8)
    BP = _round_up(B, TB)                                      # padded batch
    nb = BP // TB
    vmem_limit = int(min(vmem_cap * 3 // 4, 96 * 1024 * 1024))

    # bf16 x feed (BN is folded, so no f32 normalization needed in-kernel).
    xp = jnp.pad(x.astype(jnp.bfloat16), ((0, BP - B), (0, IN_P - in_hsz)))
    labels = jnp.pad(y.astype(jnp.int32).reshape(B, 1), ((0, BP - B), (0, 0)))

    bytes_accessed = (
        xp.size * 2 + labels.size * 4
        + (IN_P * HID_P + HID_P * H4_P + H4_P * OUTP) * 2      # bf16 weights
        + (HID_P + H4_P + OUTP) * 4                            # biases
        + BP * OUTP * 2 + nb * 4                               # outputs
    )

    def _inv_spec(shape):
        # Grid-invariant block: constant index_map + single-buffered to save VMEM.
        return pl.BlockSpec(shape, lambda i: (0, 0), pipeline_mode=pl.Buffered(1))

    kernel = functools.partial(_mlp_ce_kernel, out_hsz=out_hsz, batch=B, tile_b=TB)
    pred_slab, loss_parts = pl.pallas_call(
        kernel,
        out_shape=(
            jax.ShapeDtypeStruct((BP, OUTP), jnp.bfloat16),    # softmax probs (padded)
            jax.ShapeDtypeStruct((nb, 1), jnp.float32),        # per-tile CE sums
        ),
        grid_spec=pltpu.PrefetchScalarGridSpec(
            num_scalar_prefetch=0,
            grid=(nb,),
            in_specs=[
                pl.BlockSpec((TB, IN_P), lambda i: (i, 0)),    # x tile (bf16)
                pl.BlockSpec((TB, 1), lambda i: (i, 0)),       # labels tile
                _inv_spec((IN_P, HID_P)),                      # w1 (BN-folded, bf16)
                _inv_spec((1, HID_P)),                         # b1 (folded)
                _inv_spec((HID_P, H4_P)),                      # w2 (bf16)
                _inv_spec((1, H4_P)),                          # b2
                _inv_spec((H4_P, OUTP)),                       # w3 (bf16)
                _inv_spec((1, OUTP)),                          # b3
            ],
            out_specs=(
                pl.BlockSpec((TB, OUTP), lambda i: (i, 0)),    # lane-dense probs
                pl.BlockSpec((1, 1), lambda i: (i, 0),
                             memory_space=pltpu.MemorySpace.SMEM),  # scalar CE sum
            ),
        ),
        compiler_params=pltpu.CompilerParams(
            dimension_semantics=("parallel",),                 # independent batch tiles
            vmem_limit_bytes=vmem_limit,
        ),
        cost_estimate=pl.CostEstimate(
            flops=2 * BP * (IN_P * HID_P + HID_P * H4_P + H4_P * OUTP),
            transcendentals=BP * (OUTP + 1),
            bytes_accessed=bytes_accessed,
        ),
    )(xp, labels, w1p, b1p, w2p, b2p, w3p, b3p)

    loss = jnp.sum(loss_parts) / B
    y_pred = pred_slab[:B, :out_hsz].astype(jnp.float32)
    return loss, y_pred


def init_params(key, in_hsz, hidden_size, out_hsz):
    """Deterministic parameter init (PyTorch-style uniform ±1/sqrt(fan_in)).
    Linear weights are stored pre-transposed as [in_features, out_features]."""
    h4 = hidden_size // 4
    ks = jax.random.split(key, 6)

    def lin(kw, kb, fan_in, fan_out):
        bound = 1.0 / jnp.sqrt(float(fan_in))
        w = jax.random.uniform(kw, (fan_in, fan_out), jnp.float32, -bound, bound)
        b = jax.random.uniform(kb, (1, fan_out), jnp.float32, -bound, bound)
        return w, b

    w1, b1 = lin(ks[0], ks[1], in_hsz, hidden_size)
    w2, b2 = lin(ks[2], ks[3], hidden_size, h4)
    w3, b3 = lin(ks[4], ks[5], h4, out_hsz)
    return {
        "gamma": jnp.ones((1, in_hsz), jnp.float32),   # BN weight
        "beta": jnp.zeros((1, in_hsz), jnp.float32),   # BN bias
        "w1": w1, "b1": b1,
        "w2": w2, "b2": b2,
        "w3": w3, "b3": b3,
    }


if __name__ == "__main__":
    in_hsz, hidden_size, out_hsz = 32, 32, 4
    B = 8

    key = jax.random.PRNGKey(0)
    kx, ky, kp = jax.random.split(key, 3)

    x = jax.random.normal(kx, (B, in_hsz), jnp.float32)
    y = jax.random.randint(ky, (B,), 0, out_hsz, jnp.int32)
    params = init_params(kp, in_hsz, hidden_size, out_hsz)

    loss, y_pred = jax.jit(linear_model_forward)(x, y, params)
    jax.block_until_ready((loss, y_pred))

    assert y_pred.shape == (B, out_hsz)
    assert bool(jnp.isfinite(loss))
    # softmax rows should sum to ~1 (bf16 writeback + approx reciprocal -> loose tol)
    assert jnp.allclose(jnp.sum(y_pred, axis=-1), 1.0, atol=5e-2)
    print("KERNEL_OK")
</pallas_src>

<mosaic_0001>
module attributes {stable_mosaic.version = 11 : i64} {
  func.func @_mlp_ce_kernel(%arg0: i32, %arg1: memref<8x128xbf16, #tpu.memory_space<vmem>>, %arg2: memref<8x1xi32, #tpu.memory_space<vmem>>, %arg3: memref<128x128xbf16, #tpu.memory_space<vmem>>, %arg4: memref<1x128xf32, #tpu.memory_space<vmem>>, %arg5: memref<128x128xbf16, #tpu.memory_space<vmem>>, %arg6: memref<1x128xf32, #tpu.memory_space<vmem>>, %arg7: memref<128x128xbf16, #tpu.memory_space<vmem>>, %arg8: memref<1x128xf32, #tpu.memory_space<vmem>>, %arg9: memref<8x128xbf16, #tpu.memory_space<vmem>>, %arg10: memref<1x1xf32, #tpu.memory_space<smem>>) attributes {dimension_semantics = [#tpu.dimension_semantics<parallel>], iteration_bounds = array<i64: 1>, scalar_prefetch = 0 : i64, scratch_operands = 0 : i64, tpu.core_type = #tpu.core_type<tc>, window_params = [{transform_indices = @transform_0, window_bounds = array<i64: 8, 128>}, {transform_indices = @transform_1, window_bounds = array<i64: 8, 1>}, {pipeline_mode = #tpu.pipeline_mode<synchronous>, transform_indices = @transform_2, window_bounds = array<i64: 128, 128>}, {pipeline_mode = #tpu.pipeline_mode<synchronous>, transform_indices = @transform_3, window_bounds = array<i64: 1, 128>}, {pipeline_mode = #tpu.pipeline_mode<synchronous>, transform_indices = @transform_4, window_bounds = array<i64: 128, 128>}, {pipeline_mode = #tpu.pipeline_mode<synchronous>, transform_indices = @transform_5, window_bounds = array<i64: 1, 128>}, {pipeline_mode = #tpu.pipeline_mode<synchronous>, transform_indices = @transform_6, window_bounds = array<i64: 128, 128>}, {pipeline_mode = #tpu.pipeline_mode<synchronous>, transform_indices = @transform_7, window_bounds = array<i64: 1, 128>}, {transform_indices = @transform_8, window_bounds = array<i64: 8, 128>}, {transform_indices = @transform_9, window_bounds = array<i64: 1, 1>}]} {
    %c0 = arith.constant 0 : index
    %c0_0 = arith.constant 0 : index
    %0 = vector.load %arg1[%c0, %c0_0] : memref<8x128xbf16, #tpu.memory_space<vmem>>, vector<8x128xbf16>
    %c0_1 = arith.constant 0 : index
    %c0_2 = arith.constant 0 : index
    %1 = vector.load %arg3[%c0_1, %c0_2] : memref<128x128xbf16, #tpu.memory_space<vmem>>, vector<128x128xbf16>
    %cst = arith.constant dense<0.000000e+00> : vector<8x128xf32>
    %2 = tpu.matmul %0, %1, %cst {dimension_numbers = #tpu.dot_dimension_numbers<[1], [0], [0], [1], [0, 0, 1, 1], [], []>} : vector<8x128xbf16>, vector<128x128xbf16>, vector<8x128xf32> -> vector<8x128xf32>
    %c0_3 = arith.constant 0 : index
    %c0_4 = arith.constant 0 : index
    %3 = vector.load %arg4[%c0_3, %c0_4] : memref<1x128xf32, #tpu.memory_space<vmem>>, vector<1x128xf32>
    %4 = vector.broadcast %3 : vector<1x128xf32> to vector<8x128xf32>
    %5 = arith.addf %2, %4 : vector<8x128xf32>
    %cst_5 = arith.constant 0.000000e+00 : f32
    %6 = vector.broadcast %cst_5 : f32 to vector<8x128xf32>
    %7 = arith.maximumf %5, %6 : vector<8x128xf32>
    %8 = arith.truncf %7 : vector<8x128xf32> to vector<8x128xbf16>
    %c0_6 = arith.constant 0 : index
    %c0_7 = arith.constant 0 : index
    %9 = vector.load %arg5[%c0_6, %c0_7] : memref<128x128xbf16, #tpu.memory_space<vmem>>, vector<128x128xbf16>
    %cst_8 = arith.constant dense<0.000000e+00> : vector<8x128xf32>
    %10 = tpu.matmul %8, %9, %cst_8 {dimension_numbers = #tpu.dot_dimension_numbers<[1], [0], [0], [1], [0, 0, 1, 1], [], []>} : vector<8x128xbf16>, vector<128x128xbf16>, vector<8x128xf32> -> vector<8x128xf32>
    %c0_9 = arith.constant 0 : index
    %c0_10 = arith.constant 0 : index
    %11 = vector.load %arg6[%c0_9, %c0_10] : memref<1x128xf32, #tpu.memory_space<vmem>>, vector<1x128xf32>
    %12 = vector.broadcast %11 : vector<1x128xf32> to vector<8x128xf32>
    %13 = arith.addf %10, %12 : vector<8x128xf32>
    %cst_11 = arith.constant 0.000000e+00 : f32
    %14 = vector.broadcast %cst_11 : f32 to vector<8x128xf32>
    %15 = arith.maximumf %13, %14 : vector<8x128xf32>
    %16 = arith.truncf %15 : vector<8x128xf32> to vector<8x128xbf16>
    %c0_12 = arith.constant 0 : index
    %c0_13 = arith.constant 0 : index
    %17 = vector.load %arg7[%c0_12, %c0_13] : memref<128x128xbf16, #tpu.memory_space<vmem>>, vector<128x128xbf16>
    %cst_14 = arith.constant dense<0.000000e+00> : vector<8x128xf32>
    %18 = tpu.matmul %16, %17, %cst_14 {dimension_numbers = #tpu.dot_dimension_numbers<[1], [0], [0], [1], [0, 0, 1, 1], [], []>} : vector<8x128xbf16>, vector<128x128xbf16>, vector<8x128xf32> -> vector<8x128xf32>
    %c0_15 = arith.constant 0 : index
    %c0_16 = arith.constant 0 : index
    %19 = vector.load %arg8[%c0_15, %c0_16] : memref<1x128xf32, #tpu.memory_space<vmem>>, vector<1x128xf32>
    %20 = vector.broadcast %19 : vector<1x128xf32> to vector<8x128xf32>
    %21 = arith.addf %18, %20 : vector<8x128xf32>
    %22 = tpu.iota {dimensions = array<i32: 1>} : vector<8x128xi32>
    %c4_i32 = arith.constant 4 : i32
    %23 = vector.broadcast %c4_i32 : i32 to vector<8x128xi32>
    %24 = arith.cmpi slt, %22, %23 : vector<8x128xi32>
    %cst_17 = arith.constant -1.000000e+30 : f32
    %25 = vector.broadcast %cst_17 : f32 to vector<8x128xf32>
    %26 = arith.select %24, %21, %25 : vector<8x128xi1>, vector<8x128xf32>
    %cst_18 = arith.constant dense<0xFF800000> : vector<8xf32>
    %27 = vector.multi_reduction <maximumf>, %26, %cst_18 [1] : vector<8x128xf32> to vector<8xf32>
    %28 = vector.shape_cast %27 : vector<8xf32> to vector<8x1xf32>
    %29 = vector.broadcast %28 : vector<8x1xf32> to vector<8x128xf32>
    %30 = arith.subf %26, %29 : vector<8x128xf32>
    %31 = math.exp %30 : vector<8x128xf32>
    %cst_19 = arith.constant 0.000000e+00 : f32
    %32 = vector.broadcast %cst_19 : f32 to vector<8x128xf32>
    %33 = arith.select %24, %31, %32 : vector<8x128xi1>, vector<8x128xf32>
    %cst_20 = arith.constant dense<0.000000e+00> : vector<8xf32>
    %34 = vector.multi_reduction <add>, %33, %cst_20 [1] : vector<8x128xf32> to vector<8xf32>
    %35 = vector.shape_cast %34 : vector<8xf32> to vector<8x1xf32>
    %36 = tpu.reciprocal %35 {approx = true} : vector<8x1xf32> -> vector<8x1xf32>
    %37 = vector.broadcast %36 : vector<8x1xf32> to vector<8x128xf32>
    %38 = arith.mulf %33, %37 : vector<8x128xf32>
    %39 = arith.truncf %38 : vector<8x128xf32> to vector<8x128xbf16>
    %c0_21 = arith.constant 0 : index
    %c0_22 = arith.constant 0 : index
    %40 = vector.load %arg9[%c0_21, %c0_22] : memref<8x128xbf16, #tpu.memory_space<vmem>>, vector<8x128xbf16>
    tpu.vector_store %arg9[%c0_21, %c0_22], %39 {strides = array<i32>} : memref<8x128xbf16, #tpu.memory_space<vmem>>, vector<8x128xbf16>,
    %41 = math.log %35 : vector<8x1xf32>
    %42 = arith.addf %28, %41 : vector<8x1xf32>
    %c0_23 = arith.constant 0 : index
    %c0_24 = arith.constant 0 : index
    %43 = vector.load %arg2[%c0_23, %c0_24] : memref<8x1xi32, #tpu.memory_space<vmem>>, vector<8x1xi32>
    %44 = vector.broadcast %43 : vector<8x1xi32> to vector<8x128xi32>
    %45 = arith.cmpi eq, %22, %44 : vector<8x128xi32>
    %cst_25 = arith.constant 0.000000e+00 : f32
    %46 = vector.broadcast %cst_25 : f32 to vector<8x128xf32>
    %47 = arith.select %45, %21, %46 : vector<8x128xi1>, vector<8x128xf32>
    %cst_26 = arith.constant dense<0.000000e+00> : vector<8xf32>
    %48 = vector.multi_reduction <add>, %47, %cst_26 [1] : vector<8x128xf32> to vector<8xf32>
    %49 = vector.shape_cast %48 : vector<8xf32> to vector<8x1xf32>
    %c8_i32 = arith.constant 8 : i32
    %50 = arith.muli %arg0, %c8_i32 : i32
    %51 = tpu.iota {dimensions = array<i32: 0>} : vector<8x1xi32>
    %52 = vector.broadcast %50 : i32 to vector<8x1xi32>
    %53 = arith.addi %52, %51 : vector<8x1xi32>
    %c8_i32_27 = arith.constant 8 : i32
    %54 = vector.broadcast %c8_i32_27 : i32 to vector<8x1xi32>
    %55 = arith.cmpi slt, %53, %54 : vector<8x1xi32>
    %56 = arith.subf %42, %49 : vector<8x1xf32>
    %cst_28 = arith.constant 0.000000e+00 : f32
    %57 = vector.broadcast %cst_28 : f32 to vector<8x1xf32>
    %58 = arith.select %55, %56, %57 : vector<8x1xi1>, vector<8x1xf32>
    %59 = vector.shape_cast %58 : vector<8x1xf32> to vector<1x8x1xf32>
    %cst_29 = arith.constant dense<0.000000e+00> : vector<1xf32>
    %60 = vector.multi_reduction <add>, %59, %cst_29 [1, 2] : vector<1x8x1xf32> to vector<1xf32>
    %61 = vector.shape_cast %60 : vector<1xf32> to vector<1x1x1xf32>
    %62 = vector.extract %61[0, 0, 0] : f32 from vector<1x1x1xf32>
    %c0_30 = arith.constant 0 : index
    %c0_31 = arith.constant 0 : index
    %63 = memref.load %arg10[%c0_30, %c0_31] : memref<1x1xf32, #tpu.memory_space<smem>>
    memref.store %62, %arg10[%c0_30, %c0_31] : memref<1x1xf32, #tpu.memory_space<smem>>
    return
  }
  func.func @transform_0(%arg0: i32) -> (i32, i32) {
    %c0_i32 = arith.constant 0 : i32
    %c0_i32_0 = arith.constant 0 : i32
    return %arg0, %c0_i32 : i32, i32
  }
  func.func @transform_1(%arg0: i32) -> (i32, i32) {
    %c0_i32 = arith.constant 0 : i32
    %c0_i32_0 = arith.constant 0 : i32
    return %arg0, %c0_i32 : i32, i32
  }
  func.func @transform_2(%arg0: i32) -> (i32, i32) {
    %c0_i32 = arith.constant 0 : i32
    %c0_i32_0 = arith.constant 0 : i32
    %c0_i32_1 = arith.constant 0 : i32
    return %c0_i32, %c0_i32_0 : i32, i32
  }
  func.func @transform_3(%arg0: i32) -> (i32, i32) {
    %c0_i32 = arith.constant 0 : i32
    %c0_i32_0 = arith.constant 0 : i32
    %c0_i32_1 = arith.constant 0 : i32
    return %c0_i32, %c0_i32_0 : i32, i32
  }
  func.func @transform_4(%arg0: i32) -> (i32, i32) {
    %c0_i32 = arith.constant 0 : i32
    %c0_i32_0 = arith.constant 0 : i32
    %c0_i32_1 = arith.constant 0 : i32
    return %c0_i32, %c0_i32_0 : i32, i32
  }
  func.func @transform_5(%arg0: i32) -> (i32, i32) {
    %c0_i32 = arith.constant 0 : i32
    %c0_i32_0 = arith.constant 0 : i32
    %c0_i32_1 = arith.constant 0 : i32
    return %c0_i32, %c0_i32_0 : i32, i32
  }
  func.func @transform_6(%arg0: i32) -> (i32, i32) {
    %c0_i32 = arith.constant 0 : i32
    %c0_i32_0 = arith.constant 0 : i32
    %c0_i32_1 = arith.constant 0 : i32
    return %c0_i32, %c0_i32_0 : i32, i32
  }
  func.func @transform_7(%arg0: i32) -> (i32, i32) {
    %c0_i32 = arith.constant 0 : i32
    %c0_i32_0 = arith.constant 0 : i32
    %c0_i32_1 = arith.constant 0 : i32
    return %c0_i32, %c0_i32_0 : i32, i32
  }
  func.func @transform_8(%arg0: i32) -> (i32, i32) {
    %c0_i32 = arith.constant 0 : i32
    %c0_i32_0 = arith.constant 0 : i32
    return %arg0, %c0_i32 : i32, i32
  }
  func.func @transform_9(%arg0: i32) -> (i32, i32) {
    %c0_i32 = arith.constant 0 : i32
    %c0_i32_0 = arith.constant 0 : i32
    return %arg0, %c0_i32 : i32, i32
  }
}

</mosaic_0001>

<llo_original>
// kernel: linear_model_forward.1
$region0: #{linear_model_forward.1}
  #allocation0 [shape = 'u32[]', space=smem, size = 0x4, offset = 0x4, fixed_abs, tag = 'smem constant byte address 0x4 - core index']
  #allocation1 [shape = 'u32[144,128]{1,0:T(1,128)}', space=vmem, size = 0x12000, scoped, tag = 'internal scratch']
  %s0 = inlined_call_operand.vmem [shape: bf16[8,128], index: 0, kind: input, shape index: {}]
  %s1 = inlined_call_operand.vmem [shape: s32[8,1], index: 1, kind: input, shape index: {}]
  %s2 = inlined_call_operand.vmem [shape: bf16[128,128], index: 2, kind: input, shape index: {}]
  %s3 = inlined_call_operand.vmem [shape: f32[1,128], index: 3, kind: input, shape index: {}]
  %s4 = inlined_call_operand.vmem [shape: bf16[128,128], index: 4, kind: input, shape index: {}]
  %s5 = inlined_call_operand.vmem [shape: f32[1,128], index: 5, kind: input, shape index: {}]
  %s6 = inlined_call_operand.vmem [shape: bf16[128,128], index: 6, kind: input, shape index: {}]
  %s7 = inlined_call_operand.vmem [shape: f32[1,128], index: 7, kind: input, shape index: {}]
  %s8 = inlined_call_operand.vmem [shape: bf16[8,128], index: 8, kind: output, shape index: {0}]
  %s9 = inlined_call_operand.hbm [shape: f32[1,1], index: 9, kind: output, shape index: {1}]
  %10 = xla_tuple %s8, %s9
  %s11 = sld [smem:[#allocation0]]
  $region50: #{linear_model_forward.1} parent=0
    _
  %s13 = ssub.s32 1, %s11
  %s14 = scalar_select 0, %s13, %s11
  $region1: #{linear_model_forward.1} parent=0
    #allocation2 [shape = 'u8[512]{0}', space=smem, size = 0x200, scoped, tag = 'output window, operand 1, single buffered']
    #allocation3 [shape = 's32[1]{0}', space=sflag, size = 0x4, scoped, tag = 'scoped memory for linear_model_forward.1']
    %15 = vsyncpa [#allocation3], 0
    // Predicated region
    $region2: #{linear_model_forward.1} parent=1 // pred_check
      _
    $region3: #{linear_model_forward.1} parent=1 // pred_check_branch
      %17 = sbr.rel (0) target = $region5
    $region4: #{linear_model_forward.1} parent=1 // pred_region
      _
    $region5: #{linear_model_forward.1} parent=1 // pred_fallthru
      _
    // Predicated region
    $region6: #{linear_model_forward.1} parent=1 // pred_check
      _
    $region7: #{linear_model_forward.1} parent=1 // pred_check_branch
      %19 = sbr.rel (0) target = $region9
    $region8: #{linear_model_forward.1} parent=1 // pred_region
      _
    $region9: #{linear_model_forward.1} parent=1 // pred_fallthru
      _
    // Predicated region
    $region10: #{linear_model_forward.1} parent=1 // pred_check
      _
    $region11: #{linear_model_forward.1} parent=1 // pred_check_branch
      %21 = sbr.rel (0) target = $region13
    $region12: #{linear_model_forward.1} parent=1 // pred_region
      _
    $region13: #{linear_model_forward.1} parent=1 // pred_fallthru
      _
    // Predicated region
    $region14: #{linear_model_forward.1} parent=1 // pred_check
      _
    $region15: #{linear_model_forward.1} parent=1 // pred_check_branch
      %23 = sbr.rel (0) target = $region17
    $region16: #{linear_model_forward.1} parent=1 // pred_region
      _
    $region17: #{linear_model_forward.1} parent=1 // pred_fallthru
      _
    // Predicated region
    $region18: #{linear_model_forward.1} parent=1 // pred_check
      _
    $region19: #{linear_model_forward.1} parent=1 // pred_check_branch
      %25 = sbr.rel (0) target = $region21
    $region20: #{linear_model_forward.1} parent=1 // pred_region
      _
    $region21: #{linear_model_forward.1} parent=1 // pred_fallthru
      _
    // Predicated region
    $region22: #{linear_model_forward.1} parent=1 // pred_check
      _
    $region23: #{linear_model_forward.1} parent=1 // pred_check_branch
      %27 = sbr.rel (0) target = $region25
    $region24: #{linear_model_forward.1} parent=1 // pred_region
      _
    $region25: #{linear_model_forward.1} parent=1 // pred_fallthru
      _
    // Predicated region
    $region26: #{linear_model_forward.1} parent=1 // pred_check
      _
    $region27: #{linear_model_forward.1} parent=1 // pred_check_branch
      %29 = sbr.rel (0) target = $region29
    $region28: #{linear_model_forward.1} parent=1 // pred_region
      _
    $region29: #{linear_model_forward.1} parent=1 // pred_fallthru
      _
    // Predicated region
    $region30: #{linear_model_forward.1} parent=1 // pred_check
      _
    $region31: #{linear_model_forward.1} parent=1 // pred_check_branch
      %31 = sbr.rel (0) target = $region33
    $region32: #{linear_model_forward.1} parent=1 // pred_region
      _
    $region33: #{linear_model_forward.1} parent=1 // pred_fallthru
      _
    %v33 = vld [vmem:[%s0] sm:$0xf]
    %v34 = vld [vmem:[%s2] sm:$0xf]
    %v35 = vld [vmem:[%s2 + $0x4] sm:$0xf]
    %v36 = vld [vmem:[%s2 + $0x8] sm:$0xf]
    %v37 = vld [vmem:[%s2 + $0xc] sm:$0xf]
    %v38 = vld [vmem:[%s2 + $0x10] sm:$0xf]
    %v39 = vld [vmem:[%s2 + $0x14] sm:$0xf]
    %v40 = vld [vmem:[%s2 + $0x18] sm:$0xf]
    %v41 = vld [vmem:[%s2 + $0x1c] sm:$0xf]
    %v42 = vld [vmem:[%s2 + $0x20] sm:$0xf]
    %v43 = vld [vmem:[%s2 + $0x24] sm:$0xf]
    %v44 = vld [vmem:[%s2 + $0x28] sm:$0xf]
    %v45 = vld [vmem:[%s2 + $0x2c] sm:$0xf]
    %v46 = vld [vmem:[%s2 + $0x30] sm:$0xf]
    %v47 = vld [vmem:[%s2 + $0x34] sm:$0xf]
    %v48 = vld [vmem:[%s2 + $0x38] sm:$0xf]
    %v49 = vld [vmem:[%s2 + $0x3c] sm:$0xf]
    %v50 = vld [vmem:[%s3] sm:$0x1]
    %v52 = vlaneseq
    %v53 = vshrl.u32 %v52, 7
    %v54 = vsub.s32 0, %v53
    %v55 = vrot.slane %v50, %v54
    %v73 = vunpack.c.l.b16 %v34
    %v74 = vunpack.c.l.b16 %v35
    %v75 = vunpack.c.l.b16 %v36
    %v76 = vunpack.c.l.b16 %v37
    %v77 = vunpack.c.l.b16 %v38
    %v78 = vunpack.c.l.b16 %v39
    %v79 = vunpack.c.l.b16 %v40
    %v80 = vunpack.c.l.b16 %v41
    %v81 = vunpack.c.l.b16 %v42
    %v82 = vunpack.c.l.b16 %v43
    %v83 = vunpack.c.l.b16 %v44
    %v84 = vunpack.c.l.b16 %v45
    %v85 = vunpack.c.l.b16 %v46
    %v86 = vunpack.c.l.b16 %v47
    %v87 = vunpack.c.l.b16 %v48
    %v88 = vunpack.c.l.b16 %v49
    %v89 = vpack.c.b16 %v74, %v73
    %v90 = vpack.c.b16 %v76, %v75
    %v91 = vpack.c.b16 %v78, %v77
    %v92 = vpack.c.b16 %v80, %v79
    %v93 = vpack.c.b16 %v82, %v81
    %v94 = vpack.c.b16 %v84, %v83
    %v95 = vpack.c.b16 %v86, %v85
    %v96 = vpack.c.b16 %v88, %v87
    %105 = vmatprep.subr.bf16.mxu0 0
    %106 = vmatpush1.bf16.msra.mxu0 %v89
    %107 = vmatprep.subr.bf16.mxu0 0
    %108 = vmatpush1.bf16.msra.mxu0 %v90
    %109 = vmatprep.subr.bf16.mxu0 0
    %110 = vmatpush1.bf16.msra.mxu0 %v91
    %111 = vmatprep.subr.bf16.mxu0 0
    %112 = vmatpush1.bf16.msra.mxu0 %v92
    %113 = vmatprep.subr.bf16.mxu0 0
    %114 = vmatpush1.bf16.msra.mxu0 %v93
    %115 = vmatprep.subr.bf16.mxu0 0
    %116 = vmatpush1.bf16.msra.mxu0 %v94
    %117 = vmatprep.subr.bf16.mxu0 0
    %118 = vmatpush1.bf16.msra.mxu0 %v95
    %119 = vmatprep.subr.bf16.mxu0 0
    %120 = vmatpush1.bf16.msra.mxu0 %v96
    %121 = vmatprep.subr.bf16.mxu0 0
    %122 = vmatpush1.bf16.msra.mxu0 0
    %123 = vmatprep.subr.bf16.mxu0 0
    %124 = vmatpush1.bf16.msra.mxu0 0
    %125 = vmatprep.subr.bf16.mxu0 0
    %126 = vmatpush1.bf16.msra.mxu0 0
    %127 = vmatprep.subr.bf16.mxu0 0
    %128 = vmatpush1.bf16.msra.mxu0 0
    %129 = vmatprep.subr.bf16.mxu0 0
    %130 = vmatpush1.bf16.msra.mxu0 0
    %131 = vmatprep.subr.bf16.mxu0 0
    %132 = vmatpush1.bf16.msra.mxu0 0
    %133 = vmatprep.subr.bf16.mxu0 0
    %134 = vmatpush1.bf16.msra.mxu0 0
    %135 = vmatprep.subr.bf16.mxu0 0
    %136 = vmatpush1.bf16.msra.mxu0 0
    %137 = vmatprep.mubr.bf16.mxu0 0
    %138 = vmatmul.mubr.bf16.gmra.mrb[0].mxu0 %v33
    %v139 = vpop.f32.mrb[0].mxu0
    %v140 = vadd.f32 %v55, %v139
    %v141 = vpop.f32.mrb[0].mxu0
    %v142 = vpop.f32.mrb[0].mxu0
    %v143 = vpop.f32.mrb[0].mxu0
    %144 = vdwg.mxu0
    %v145 = vmax.f32 %v140, 0.0
    %v146 = vpack.c.bf16 %v145, %v145
    %v147 = vld [vmem:[%s4] sm:$0xf]
    %v148 = vld [vmem:[%s4 + $0x4] sm:$0xf]
    %v149 = vld [vmem:[%s4 + $0x8] sm:$0xf]
    %v150 = vld [vmem:[%s4 + $0xc] sm:$0xf]
    %v151 = vld [vmem:[%s4 + $0x10] sm:$0xf]
    %v152 = vld [vmem:[%s4 + $0x14] sm:$0xf]
    %v153 = vld [vmem:[%s4 + $0x18] sm:$0xf]
    %v154 = vld [vmem:[%s4 + $0x1c] sm:$0xf]
    %v155 = vld [vmem:[%s4 + $0x20] sm:$0xf]
    %v156 = vld [vmem:[%s4 + $0x24] sm:$0xf]
    %v157 = vld [vmem:[%s4 + $0x28] sm:$0xf]
    %v158 = vld [vmem:[%s4 + $0x2c] sm:$0xf]
    %v159 = vld [vmem:[%s4 + $0x30] sm:$0xf]
    %v160 = vld [vmem:[%s4 + $0x34] sm:$0xf]
    %v161 = vld [vmem:[%s4 + $0x38] sm:$0xf]
    %v162 = vld [vmem:[%s4 + $0x3c] sm:$0xf]
    %v163 = vld [vmem:[%s5] sm:$0x1]
    %v165 = vlaneseq
    %v166 = vshrl.u32 %v165, 7
    %v167 = vsub.s32 0, %v166
    %v168 = vrot.slane %v163, %v167
    %v186 = vunpack.c.l.b16 %v147
    %v187 = vunpack.c.l.b16 %v148
    %v188 = vunpack.c.l.b16 %v149
    %v189 = vunpack.c.l.b16 %v150
    %v190 = vunpack.c.l.b16 %v151
    %v191 = vunpack.c.l.b16 %v152
    %v192 = vunpack.c.l.b16 %v153
    %v193 = vunpack.c.l.b16 %v154
    %v194 = vunpack.c.l.b16 %v155
    %v195 = vunpack.c.l.b16 %v156
    %v196 = vunpack.c.l.b16 %v157
    %v197 = vunpack.c.l.b16 %v158
    %v198 = vunpack.c.l.b16 %v159
    %v199 = vunpack.c.l.b16 %v160
    %v200 = vunpack.c.l.b16 %v161
    %v201 = vunpack.c.l.b16 %v162
    %v202 = vpack.c.b16 %v187, %v186
    %v203 = vpack.c.b16 %v189, %v188
    %v204 = vpack.c.b16 %v191, %v190
    %v205 = vpack.c.b16 %v193, %v192
    %v206 = vpack.c.b16 %v195, %v194
    %v207 = vpack.c.b16 %v197, %v196
    %v208 = vpack.c.b16 %v199, %v198
    %v209 = vpack.c.b16 %v201, %v200
    %218 = vmatprep.subr.bf16.mxu0 0
    %219 = vmatpush1.bf16.msra.mxu0 %v202
    %220 = vmatprep.subr.bf16.mxu0 0
    %221 = vmatpush1.bf16.msra.mxu0 %v203
    %222 = vmatprep.subr.bf16.mxu0 0
    %223 = vmatpush1.bf16.msra.mxu0 %v204
    %224 = vmatprep.subr.bf16.mxu0 0
    %225 = vmatpush1.bf16.msra.mxu0 %v205
    %226 = vmatprep.subr.bf16.mxu0 0
    %227 = vmatpush1.bf16.msra.mxu0 %v206
    %228 = vmatprep.subr.bf16.mxu0 0
    %229 = vmatpush1.bf16.msra.mxu0 %v207
    %230 = vmatprep.subr.bf16.mxu0 0
    %231 = vmatpush1.bf16.msra.mxu0 %v208
    %232 = vmatprep.subr.bf16.mxu0 0
    %233 = vmatpush1.bf16.msra.mxu0 %v209
    %234 = vmatprep.subr.bf16.mxu0 0
    %235 = vmatpush1.bf16.msra.mxu0 0
    %236 = vmatprep.subr.bf16.mxu0 0
    %237 = vmatpush1.bf16.msra.mxu0 0
    %238 = vmatprep.subr.bf16.mxu0 0
    %239 = vmatpush1.bf16.msra.mxu0 0
    %240 = vmatprep.subr.bf16.mxu0 0
    %241 = vmatpush1.bf16.msra.mxu0 0
    %242 = vmatprep.subr.bf16.mxu0 0
    %243 = vmatpush1.bf16.msra.mxu0 0
    %244 = vmatprep.subr.bf16.mxu0 0
    %245 = vmatpush1.bf16.msra.mxu0 0
    %246 = vmatprep.subr.bf16.mxu0 0
    %247 = vmatpush1.bf16.msra.mxu0 0
    %248 = vmatprep.subr.bf16.mxu0 0
    %249 = vmatpush1.bf16.msra.mxu0 0
    %250 = vmatprep.mubr.bf16.mxu0 0
    %251 = vmatmul.mubr.bf16.gmra.mrb[0].mxu0 %v146
    %v252 = vpop.f32.mrb[0].mxu0
    %v253 = vadd.f32 %v168, %v252
    %v254 = vpop.f32.mrb[0].mxu0
    %v255 = vpop.f32.mrb[0].mxu0
    %v256 = vpop.f32.mrb[0].mxu0
    %257 = vdwg.mxu0
    %v258 = vmax.f32 %v253, 0.0
    %v259 = vpack.c.bf16 %v258, %v258
    %v260 = vld [vmem:[%s6] sm:$0xf]
    %v261 = vld [vmem:[%s6 + $0x4] sm:$0xf]
    %v262 = vld [vmem:[%s6 + $0x8] sm:$0xf]
    %v263 = vld [vmem:[%s6 + $0xc] sm:$0xf]
    %v264 = vld [vmem:[%s6 + $0x10] sm:$0xf]
    %v265 = vld [vmem:[%s6 + $0x14] sm:$0xf]
    %v266 = vld [vmem:[%s6 + $0x18] sm:$0xf]
    %v267 = vld [vmem:[%s6 + $0x1c] sm:$0xf]
    %v268 = vld [vmem:[%s6 + $0x20] sm:$0xf]
    %v269 = vld [vmem:[%s6 + $0x24] sm:$0xf]
    %v270 = vld [vmem:[%s6 + $0x28] sm:$0xf]
    %v271 = vld [vmem:[%s6 + $0x2c] sm:$0xf]
    %v272 = vld [vmem:[%s6 + $0x30] sm:$0xf]
    %v273 = vld [vmem:[%s6 + $0x34] sm:$0xf]
    %v274 = vld [vmem:[%s6 + $0x38] sm:$0xf]
    %v275 = vld [vmem:[%s6 + $0x3c] sm:$0xf]
    %v276 = vld [vmem:[%s7] sm:$0x1]
    %v278 = vlaneseq
    %v279 = vshrl.u32 %v278, 7
    %v280 = vsub.s32 0, %v279
    %v281 = vrot.slane %v276, %v280
    %v299 = vunpack.c.l.b16 %v260
    %v300 = vunpack.c.l.b16 %v261
    %v301 = vunpack.c.l.b16 %v262
    %v302 = vunpack.c.l.b16 %v263
    %v303 = vunpack.c.l.b16 %v264
    %v304 = vunpack.c.l.b16 %v265
    %v305 = vunpack.c.l.b16 %v266
    %v306 = vunpack.c.l.b16 %v267
    %v307 = vunpack.c.l.b16 %v268
    %v308 = vunpack.c.l.b16 %v269
    %v309 = vunpack.c.l.b16 %v270
    %v310 = vunpack.c.l.b16 %v271
    %v311 = vunpack.c.l.b16 %v272
    %v312 = vunpack.c.l.b16 %v273
    %v313 = vunpack.c.l.b16 %v274
    %v314 = vunpack.c.l.b16 %v275
    %v315 = vpack.c.b16 %v300, %v299
    %v316 = vpack.c.b16 %v302, %v301
    %v317 = vpack.c.b16 %v304, %v303
    %v318 = vpack.c.b16 %v306, %v305
    %v319 = vpack.c.b16 %v308, %v307
    %v320 = vpack.c.b16 %v310, %v309
    %v321 = vpack.c.b16 %v312, %v311
    %v322 = vpack.c.b16 %v314, %v313
    %331 = vmatprep.subr.bf16.mxu0 0
    %332 = vmatpush1.bf16.msra.mxu0 %v315
    %333 = vmatprep.subr.bf16.mxu0 0
    %334 = vmatpush1.bf16.msra.mxu0 %v316
    %335 = vmatprep.subr.bf16.mxu0 0
    %336 = vmatpush1.bf16.msra.mxu0 %v317
    %337 = vmatprep.subr.bf16.mxu0 0
    %338 = vmatpush1.bf16.msra.mxu0 %v318
    %339 = vmatprep.subr.bf16.mxu0 0
    %340 = vmatpush1.bf16.msra.mxu0 %v319
    %341 = vmatprep.subr.bf16.mxu0 0
    %342 = vmatpush1.bf16.msra.mxu0 %v320
    %343 = vmatprep.subr.bf16.mxu0 0
    %344 = vmatpush1.bf16.msra.mxu0 %v321
    %345 = vmatprep.subr.bf16.mxu0 0
    %346 = vmatpush1.bf16.msra.mxu0 %v322
    %347 = vmatprep.subr.bf16.mxu0 0
    %348 = vmatpush1.bf16.msra.mxu0 0
    %349 = vmatprep.subr.bf16.mxu0 0
    %350 = vmatpush1.bf16.msra.mxu0 0
    %351 = vmatprep.subr.bf16.mxu0 0
    %352 = vmatpush1.bf16.msra.mxu0 0
    %353 = vmatprep.subr.bf16.mxu0 0
    %354 = vmatpush1.bf16.msra.mxu0 0
    %355 = vmatprep.subr.bf16.mxu0 0
    %356 = vmatpush1.bf16.msra.mxu0 0
    %357 = vmatprep.subr.bf16.mxu0 0
    %358 = vmatpush1.bf16.msra.mxu0 0
    %359 = vmatprep.subr.bf16.mxu0 0
    %360 = vmatpush1.bf16.msra.mxu0 0
    %361 = vmatprep.subr.bf16.mxu0 0
    %362 = vmatpush1.bf16.msra.mxu0 0
    %363 = vmatprep.mubr.bf16.mxu0 0
    %364 = vmatmul.mubr.bf16.gmra.mrb[0].mxu0 %v259
    %v365 = vpop.f32.mrb[0].mxu0
    %v366 = vadd.f32 %v281, %v365
    %v367 = vpop.f32.mrb[0].mxu0
    %v368 = vpop.f32.mrb[0].mxu0
    %v369 = vpop.f32.mrb[0].mxu0
    %370 = vdwg.mxu0
    %v371 = vlaneseq
    %v372 = vand.u32 %v371, 127
    %vm373 = vcmp.lt.s32.totalorder %v372, 4
    %v374 = vsel %vm373, %v366, -1e+30
    %375 = vmax.xlane.f32.xlu0 %v374
    %v376 = vpop.xlane.xlu0 %375
    %v377 = vsub.f32 %v374, %v376
    %v378 = vmul.f32 %v377, 1.442695
    %v379 = vpow.pop %v378
    %v380 = vsel %vm373, %v379, 0.0
    %381 = vadd.xlane.f32.xlu0 %v380
    %v382 = vpop.xlane.xlu0 %381
    %v383 = vrcp.pop %v382
    %v384 = vmul.f32 %v380, %v383
    %v385 = vpack.c.bf16 %v384, %v384
    %386 = vst [vmem:[%s8] sm:$0xf] %v385
    %v387 = vlog2.pop %v382
    %v388 = vmul.f32 %v387, 0.6931472
    %v389 = vadd.f32 %v376, %v388
    %v390 = vld [vmem:[%s1] sm:$0xff]
    %391 = vset.pattern.permute.xlu0 0
    %392 = vperm.xlu0 %391, %v390
    %v393 = vpop.permute.xlu0 %392
    %vm394 = vcmp.eq.s32.totalorder %v372, %v393
    %v395 = vsel %vm394, %v366, 0.0
    %396 = vadd.xlane.f32.xlu0 %v395
    %v397 = vpop.xlane.xlu0 %396
    %s398 = smul.u32 0, 8
    %v399 = vlaneseq
    %v400 = vshrl.u32 %v399, 7
    %v401 = vstv %s398
    %v402 = vadd.s32 %v401, %v400
    %vm403 = vcmp.lt.s32.totalorder %v402, 8
    %v404 = vsub.f32 %v389, %v397
    %v405 = vsel %vm403, %v404, 0.0
    %vm406 = vcmask 7168
    %v407 = vsel %vm406, %v405, 0.0
    %408 = vadd.xlane.f32.xlu0 %v407
    %v409 = vpop.xlane.xlu0 %408
    %v410 = vrot.slane %v409, 4
    %v411 = vadd.f32 %v409, %v410
    %v412 = vrot.slane %v411, 2
    %v413 = vadd.f32 %v411, %v412
    %v414 = vrot.slane %v413, 1
    %v415 = vadd.f32 %v413, %v414
    %s416 = vtos %v415
    %s417 = scalar_lea.smem [#allocation2], 0
    %418 = sst [smem:[%s417]] %s416
    // Predicated region
    $region34: #{linear_model_forward.1} parent=1 // pred_check
      _
    $region35: #{linear_model_forward.1} parent=1 // pred_check_branch
      %420 = sbr.rel (0) target = $region37
    $region36: #{linear_model_forward.1} parent=1 // pred_region
      _
    $region37: #{linear_model_forward.1} parent=1 // pred_fallthru
      _
    // Predicated region
    $region38: #{linear_model_forward.1} parent=1 // pred_check
      _
    $region39: #{linear_model_forward.1} parent=1 // pred_check_branch
      %422 = sbr.rel (0) target = $region41
    $region40: #{linear_model_forward.1} parent=1 // pred_region
      %s424 = ssub.s32 16, 16
      %425 = vsyncadd [#allocation3], %s424
      %428 = dma.smem_to_hbm [#allocation2], 16, %s9, [#allocation3]
    $region41: #{linear_model_forward.1} parent=1 // pred_fallthru
      _
    // Predicated region
    $region42: #{linear_model_forward.1} parent=1 // pred_check
      _
    $region43: #{linear_model_forward.1} parent=1 // pred_check_branch
      %430 = sbr.rel (0) target = $region45
    $region44: #{linear_model_forward.1} parent=1 // pred_region
      _
    $region45: #{linear_model_forward.1} parent=1 // pred_fallthru
      _
    // Predicated region
    $region46: #{linear_model_forward.1} parent=1 // pred_check
      _
    $region47: #{linear_model_forward.1} parent=1 // pred_check_branch
      %432 = sbr.rel (0) target = $region49
    $region48: #{linear_model_forward.1} parent=1 // pred_region
      %433 = dma.done [#allocation3], 16
    $region49: #{linear_model_forward.1} parent=1 // pred_fallthru
      _
    %434 = sfence
    %435 = vsyncpa [#allocation3], 1

</llo_original>
